<compile_context>
chip_gen: v5e
topology: v5e:2x2
jax: 0.10.0
libtpu: 0.0.40
codegen_flags: <defaults>
</compile_context>

<pallas_src>
import jax
import jax.numpy as jnp
from jax.experimental import pallas as pl
from jax.experimental.pallas import tpu as pltpu

_LANES = 128


def _loss_kernel(p_ref, t_ref, m_ref, out_ref, acc_sq, acc_m):
    i = pl.program_id(0)

    @pl.when(i == 0)
    def _init():
        acc_sq[...] = jnp.zeros_like(acc_sq)
        acc_m[...] = jnp.zeros_like(acc_m)

    # Upcast in-kernel (inputs may arrive as bf16); accumulate in f32.
    p = p_ref[...].astype(jnp.float32)
    t = t_ref[...].astype(jnp.float32)
    m = m_ref[...].astype(jnp.float32)

    d = (p - t) * m          # == p*m - t*m for a {0,1} mask (ULP-close otherwise)
    sq = d * d

    # Per-lane partial sums: reshape to (k, 8, 128) vreg slabs and add them —
    # pure VPU work, no cross-lane XLU traffic inside the loop.
    acc_sq[...] += jnp.sum(sq.reshape(-1, 8, _LANES), axis=0)
    acc_m[...] += jnp.sum(m.reshape(-1, 8, _LANES), axis=0)

    @pl.when(i == pl.num_programs(0) - 1)
    def _finalize():
        sq_sum = jnp.sum(acc_sq[...])
        # Expanded per-element mask counts every (b, joint) entry 3x.
        m_sum = jnp.sum(acc_m[...]) / 3.0
        # NOTE: mask.sum() == 0 yields inf/nan, same as the PyTorch reference.
        out_ref[0, 0] = sq_sum / m_sum


def loss_annotation_3d(pred, target, mask, *, max_tile_rows=512):
    """pred/target: (B, 17, 3), mask: (B, 17, 1) -> scalar f32 loss."""
    B, J, C = pred.shape
    n = B * J * C

    # Expand the mask per element so all three arrays share one layout.
    mask_e = jnp.broadcast_to(mask, (B, J, C))

    # Flatten + zero-pad into a lane-dense (rows, 128) view.
    rows_min = -(-n // _LANES)
    tile_rows = min(max_tile_rows, ((rows_min + 7) // 8) * 8)
    tile_rows = max(8, (tile_rows // 8) * 8)
    rows = ((rows_min + tile_rows - 1) // tile_rows) * tile_rows
    padded = rows * _LANES

    def _to_lane_dense(x):
        xf = x.reshape(-1)
        xf = jnp.pad(xf, (0, padded - n))
        return xf.reshape(rows, _LANES)

    p2 = _to_lane_dense(pred)
    t2 = _to_lane_dense(target)
    m2 = _to_lane_dense(mask_e)

    num_tiles = rows // tile_rows
    bytes_in = (p2.size * p2.dtype.itemsize
                + t2.size * t2.dtype.itemsize
                + m2.size * m2.dtype.itemsize)

    grid_spec = pltpu.PrefetchScalarGridSpec(
        num_scalar_prefetch=0,
        grid=(num_tiles,),
        in_specs=[
            pl.BlockSpec((tile_rows, _LANES), lambda i: (i, 0)),
            pl.BlockSpec((tile_rows, _LANES), lambda i: (i, 0)),
            pl.BlockSpec((tile_rows, _LANES), lambda i: (i, 0)),
        ],
        out_specs=pl.BlockSpec(memory_space=pltpu.SMEM),
        scratch_shapes=[
            pltpu.VMEM((8, _LANES), jnp.float32),   # per-lane sq-error partials
            pltpu.VMEM((8, _LANES), jnp.float32),   # per-lane mask partials
        ],
    )

    out = pl.pallas_call(
        _loss_kernel,
        out_shape=jax.ShapeDtypeStruct((1, 1), jnp.float32),
        grid_spec=grid_spec,
        compiler_params=pltpu.CompilerParams(
            dimension_semantics=("arbitrary",)),
        cost_estimate=pl.CostEstimate(
            flops=5 * n, transcendentals=0, bytes_accessed=bytes_in + 4),
    )(p2, t2, m2)
    return out[0, 0]


def _reference(pred, target, mask):
    # Pure-JAX reference mirroring the PyTorch semantics exactly.
    pm = pred.astype(jnp.float32) * mask.astype(jnp.float32)
    tm = target.astype(jnp.float32) * mask.astype(jnp.float32)
    return jnp.sum((pm - tm) ** 2) / jnp.sum(mask.astype(jnp.float32))


if __name__ == "__main__":
    key = jax.random.PRNGKey(0)
    k1, k2, k3, k4, k5, k6 = jax.random.split(key, 6)

    # Small case at the module's documented shapes.
    B = 2
    pred = jax.random.normal(k1, (B, 17, 3), dtype=jnp.float32)
    target = jax.random.normal(k2, (B, 17, 3), dtype=jnp.float32)
    mask = (jax.random.uniform(k3, (B, 17, 1)) > 0.3).astype(jnp.float32)

    loss = loss_annotation_3d(pred, target, mask)
    jax.block_until_ready(loss)
    ref = _reference(pred, target, mask)
    assert jnp.allclose(loss, ref, rtol=1e-5, atol=1e-5), (loss, ref)

    # Larger batch exercising the multi-tile grid + resident accumulator path.
    B2 = 2000
    pred2 = jax.random.normal(k4, (B2, 17, 3), dtype=jnp.float32)
    target2 = jax.random.normal(k5, (B2, 17, 3), dtype=jnp.float32)
    mask2 = (jax.random.uniform(k6, (B2, 17, 1)) > 0.3).astype(jnp.float32)

    loss2 = loss_annotation_3d(pred2, target2, mask2)
    jax.block_until_ready(loss2)
    ref2 = _reference(pred2, target2, mask2)
    assert jnp.allclose(loss2, ref2, rtol=1e-4, atol=1e-4), (loss2, ref2)

    print("KERNEL_OK")
</pallas_src>

<mosaic_0001>
module attributes {stable_mosaic.version = 11 : i64} {
  func.func @_loss_kernel(%arg0: i32, %arg1: memref<8x128xf32, #tpu.memory_space<vmem>>, %arg2: memref<8x128xf32, #tpu.memory_space<vmem>>, %arg3: memref<8x128xf32, #tpu.memory_space<vmem>>, %arg4: memref<1x1xf32, #tpu.memory_space<smem>>, %arg5: memref<8x128xf32, #tpu.memory_space<vmem>>, %arg6: memref<8x128xf32, #tpu.memory_space<vmem>>) attributes {dimension_semantics = [#tpu.dimension_semantics<arbitrary>], iteration_bounds = array<i64: 1>, scalar_prefetch = 0 : i64, scratch_operands = 2 : i64, tpu.core_type = #tpu.core_type<tc>, window_params = [{transform_indices = @transform_0, window_bounds = array<i64: 8, 128>}, {transform_indices = @transform_1, window_bounds = array<i64: 8, 128>}, {transform_indices = @transform_2, window_bounds = array<i64: 8, 128>}, {transform_indices = @transform_3, window_bounds = array<i64: 1, 1>}]} {
    %c0_i32 = arith.constant 0 : i32
    %0 = arith.cmpi eq, %arg0, %c0_i32 : i32
    %1 = arith.extui %0 : i1 to i32
    %c0_i32_0 = arith.constant 0 : i32
    %2 = arith.cmpi ne, %1, %c0_i32_0 : i32
    scf.if %2 {
      %cst_17 = arith.constant 0.000000e+00 : f32
      %22 = vector.broadcast %cst_17 : f32 to vector<8x128xf32>
      %c0_18 = arith.constant 0 : index
      %c0_19 = arith.constant 0 : index
      %23 = vector.load %arg5[%c0_18, %c0_19] : memref<8x128xf32, #tpu.memory_space<vmem>>, vector<8x128xf32>
      tpu.vector_store %arg5[%c0_18, %c0_19], %22 {strides = array<i32>} : memref<8x128xf32, #tpu.memory_space<vmem>>, vector<8x128xf32>,
      %cst_20 = arith.constant 0.000000e+00 : f32
      %24 = vector.broadcast %cst_20 : f32 to vector<8x128xf32>
      %c0_21 = arith.constant 0 : index
      %c0_22 = arith.constant 0 : index
      %25 = vector.load %arg6[%c0_21, %c0_22] : memref<8x128xf32, #tpu.memory_space<vmem>>, vector<8x128xf32>
      tpu.vector_store %arg6[%c0_21, %c0_22], %24 {strides = array<i32>} : memref<8x128xf32, #tpu.memory_space<vmem>>, vector<8x128xf32>,
    } else {
    }
    %c0 = arith.constant 0 : index
    %c0_1 = arith.constant 0 : index
    %3 = vector.load %arg1[%c0, %c0_1] : memref<8x128xf32, #tpu.memory_space<vmem>>, vector<8x128xf32>
    %c0_2 = arith.constant 0 : index
    %c0_3 = arith.constant 0 : index
    %4 = vector.load %arg2[%c0_2, %c0_3] : memref<8x128xf32, #tpu.memory_space<vmem>>, vector<8x128xf32>
    %c0_4 = arith.constant 0 : index
    %c0_5 = arith.constant 0 : index
    %5 = vector.load %arg3[%c0_4, %c0_5] : memref<8x128xf32, #tpu.memory_space<vmem>>, vector<8x128xf32>
    %6 = arith.subf %3, %4 : vector<8x128xf32>
    %7 = arith.mulf %6, %5 : vector<8x128xf32>
    %8 = arith.mulf %7, %7 : vector<8x128xf32>
    %c0_6 = arith.constant 0 : index
    %c0_7 = arith.constant 0 : index
    %9 = vector.load %arg5[%c0_6, %c0_7] : memref<8x128xf32, #tpu.memory_space<vmem>>, vector<8x128xf32>
    %10 = vector.shape_cast %8 : vector<8x128xf32> to vector<1x8x128xf32>
    %cst = arith.constant dense<0.000000e+00> : vector<8x128xf32>
    %11 = vector.multi_reduction <add>, %10, %cst [0] : vector<1x8x128xf32> to vector<8x128xf32>
    %12 = arith.addf %9, %11 : vector<8x128xf32>
    %c0_8 = arith.constant 0 : index
    %c0_9 = arith.constant 0 : index
    %13 = vector.load %arg5[%c0_8, %c0_9] : memref<8x128xf32, #tpu.memory_space<vmem>>, vector<8x128xf32>
    tpu.vector_store %arg5[%c0_8, %c0_9], %12 {strides = array<i32>} : memref<8x128xf32, #tpu.memory_space<vmem>>, vector<8x128xf32>,
    %c0_10 = arith.constant 0 : index
    %c0_11 = arith.constant 0 : index
    %14 = vector.load %arg6[%c0_10, %c0_11] : memref<8x128xf32, #tpu.memory_space<vmem>>, vector<8x128xf32>
    %15 = vector.shape_cast %5 : vector<8x128xf32> to vector<1x8x128xf32>
    %cst_12 = arith.constant dense<0.000000e+00> : vector<8x128xf32>
    %16 = vector.multi_reduction <add>, %15, %cst_12 [0] : vector<1x8x128xf32> to vector<8x128xf32>
    %17 = arith.addf %14, %16 : vector<8x128xf32>
    %c0_13 = arith.constant 0 : index
    %c0_14 = arith.constant 0 : index
    %18 = vector.load %arg6[%c0_13, %c0_14] : memref<8x128xf32, #tpu.memory_space<vmem>>, vector<8x128xf32>
    tpu.vector_store %arg6[%c0_13, %c0_14], %17 {strides = array<i32>} : memref<8x128xf32, #tpu.memory_space<vmem>>, vector<8x128xf32>,
    %c0_i32_15 = arith.constant 0 : i32
    %19 = arith.cmpi eq, %arg0, %c0_i32_15 : i32
    %20 = arith.extui %19 : i1 to i32
    %c0_i32_16 = arith.constant 0 : i32
    %21 = arith.cmpi ne, %20, %c0_i32_16 : i32
    scf.if %21 {
      %c0_17 = arith.constant 0 : index
      %c0_18 = arith.constant 0 : index
      %22 = vector.load %arg5[%c0_17, %c0_18] : memref<8x128xf32, #tpu.memory_space<vmem>>, vector<8x128xf32>
      %23 = vector.shape_cast %22 : vector<8x128xf32> to vector<1x8x128xf32>
      %cst_19 = arith.constant dense<0.000000e+00> : vector<1xf32>
      %24 = vector.multi_reduction <add>, %23, %cst_19 [1, 2] : vector<1x8x128xf32> to vector<1xf32>
      %25 = vector.shape_cast %24 : vector<1xf32> to vector<1x1x1xf32>
      %26 = vector.extract %25[0, 0, 0] : f32 from vector<1x1x1xf32>
      %c0_20 = arith.constant 0 : index
      %c0_21 = arith.constant 0 : index
      %27 = vector.load %arg6[%c0_20, %c0_21] : memref<8x128xf32, #tpu.memory_space<vmem>>, vector<8x128xf32>
      %28 = vector.shape_cast %27 : vector<8x128xf32> to vector<1x8x128xf32>
      %cst_22 = arith.constant dense<0.000000e+00> : vector<1xf32>
      %29 = vector.multi_reduction <add>, %28, %cst_22 [1, 2] : vector<1x8x128xf32> to vector<1xf32>
      %30 = vector.shape_cast %29 : vector<1xf32> to vector<1x1x1xf32>
      %31 = vector.extract %30[0, 0, 0] : f32 from vector<1x1x1xf32>
      %cst_23 = arith.constant 3.000000e+00 : f32
      %32 = arith.divf %31, %cst_23 : f32
      %33 = arith.divf %26, %32 : f32
      %c0_24 = arith.constant 0 : index
      %c0_25 = arith.constant 0 : index
      %34 = memref.load %arg4[%c0_24, %c0_25] : memref<1x1xf32, #tpu.memory_space<smem>>
      memref.store %33, %arg4[%c0_24, %c0_25] : memref<1x1xf32, #tpu.memory_space<smem>>
    } else {
    }
    return
  }
  func.func @transform_0(%arg0: i32) -> (i32, i32) {
    %c0_i32 = arith.constant 0 : i32
    %c0_i32_0 = arith.constant 0 : i32
    return %arg0, %c0_i32 : i32, i32
  }
  func.func @transform_1(%arg0: i32) -> (i32, i32) {
    %c0_i32 = arith.constant 0 : i32
    %c0_i32_0 = arith.constant 0 : i32
    return %arg0, %c0_i32 : i32, i32
  }
  func.func @transform_2(%arg0: i32) -> (i32, i32) {
    %c0_i32 = arith.constant 0 : i32
    %c0_i32_0 = arith.constant 0 : i32
    return %arg0, %c0_i32 : i32, i32
  }
  func.func @transform_3(%arg0: i32) -> (i32, i32) {
    %c0_i32 = arith.constant 0 : i32
    %c0_i32_0 = arith.constant 0 : i32
    %c0_i32_1 = arith.constant 0 : i32
    return %c0_i32, %c0_i32_0 : i32, i32
  }
}

</mosaic_0001>

<llo_original>
// kernel: tpu_custom_call.1
$region0: #{tpu_custom_call.1}
  #allocation0 [shape = 'u32[]', space=smem, size = 0x4, offset = 0x4, fixed_abs, tag = 'smem constant byte address 0x4 - core index']
  #allocation1 [shape = 'u32[72,128]{1,0:T(1,128)}', space=vmem, size = 0x9000, scoped, tag = 'internal scratch']
  #allocation2 [shape = 'f32[8,128]{1,0:T(8,128)}', space=vmem, size = 0x1000, scoped, tag = 'scratch operand']
  #allocation3 [shape = 'f32[8,128]{1,0:T(8,128)}', space=vmem, size = 0x1000, scoped, tag = 'scratch operand']
  %s0 = inlined_call_operand.hbm [shape: f32[8,128], index: 0, kind: input, shape index: {}]
  %s1 = inlined_call_operand.hbm [shape: f32[8,128], index: 1, kind: input, shape index: {}]
  %s2 = inlined_call_operand.hbm [shape: f32[8,128], index: 2, kind: input, shape index: {}]
  %s3 = inlined_call_operand.hbm [shape: f32[1,1], index: 3, kind: output, shape index: {}]
  %s4 = sld [smem:[#allocation0]]
  $region42: #{tpu_custom_call.1} parent=0
    _
  %s6 = ssub.s32 1, %s4
  %s7 = scalar_select 0, %s6, %s4
  $region1: #{tpu_custom_call.1} parent=0
    #allocation4 [shape = 'u8[4096]{0}', space=vmem, size = 0x1000, scoped, tag = 'input window, operand 0, single buffered']
    #allocation5 [shape = 's32[1]{0}', space=sflag, size = 0x4, scoped, tag = 'scoped memory for tpu_custom_call.1']
    #allocation6 [shape = 's32[1]{0}', space=sflag, size = 0x4, scoped, tag = 'scoped memory for tpu_custom_call.1']
    #allocation7 [shape = 'u8[4096]{0}', space=vmem, size = 0x1000, scoped, tag = 'input window, operand 1, single buffered']
    #allocation8 [shape = 's32[1]{0}', space=sflag, size = 0x4, scoped, tag = 'scoped memory for tpu_custom_call.1']
    #allocation9 [shape = 'u8[4096]{0}', space=vmem, size = 0x1000, scoped, tag = 'input window, operand 2, single buffered']
    #allocation10 [shape = 'u8[512]{0}', space=smem, size = 0x200, scoped, tag = 'output window, operand 0, single buffered']
    %8 = vsyncpa [#allocation5], 0
    %9 = vsyncpa [#allocation8], 0
    %10 = vsyncpa [#allocation6], 0
    // Predicated region
    $region2: #{tpu_custom_call.1} parent=1 // pred_check
      _
    $region3: #{tpu_custom_call.1} parent=1 // pred_check_branch
      %12 = sbr.rel (0) target = $region5
    $region4: #{tpu_custom_call.1} parent=1 // pred_region
      %14 = vsyncadd [#allocation5], 0
      %s16 = sshll.u32 %s0, 4
      %s17 = int_to_ptr.hbm [resolvable:$true] %s16
      %s18 = sshll.u32 [#allocation4], 4
      %s19 = int_to_ptr.vmem [resolvable:$true] %s18
      %21 = dma.hbm_to_vmem [thread:$0]  %s17, 128, %s19, [#allocation5]
    $region5: #{tpu_custom_call.1} parent=1 // pred_fallthru
      _
    // Predicated region
    $region6: #{tpu_custom_call.1} parent=1 // pred_check
      _
    $region7: #{tpu_custom_call.1} parent=1 // pred_check_branch
      %23 = sbr.rel (0) target = $region9
    $region8: #{tpu_custom_call.1} parent=1 // pred_region
      %25 = vsyncadd [#allocation8], 0
      %s27 = sshll.u32 %s1, 4
      %s28 = int_to_ptr.hbm [resolvable:$true] %s27
      %s29 = sshll.u32 [#allocation7], 4
      %s30 = int_to_ptr.vmem [resolvable:$true] %s29
      %32 = dma.hbm_to_vmem [thread:$0]  %s28, 128, %s30, [#allocation8]
    $region9: #{tpu_custom_call.1} parent=1 // pred_fallthru
      _
    // Predicated region
    $region10: #{tpu_custom_call.1} parent=1 // pred_check
      _
    $region11: #{tpu_custom_call.1} parent=1 // pred_check_branch
      %34 = sbr.rel (0) target = $region13
    $region12: #{tpu_custom_call.1} parent=1 // pred_region
      %36 = vsyncadd [#allocation8], 0
      %s38 = sshll.u32 %s2, 4
      %s39 = int_to_ptr.hbm [resolvable:$true] %s38
      %s40 = sshll.u32 [#allocation9], 4
      %s41 = int_to_ptr.vmem [resolvable:$true] %s40
      %43 = dma.hbm_to_vmem [thread:$0]  %s39, 128, %s41, [#allocation8]
    $region13: #{tpu_custom_call.1} parent=1 // pred_fallthru
      _
    // Predicated region
    $region14: #{tpu_custom_call.1} parent=1 // pred_check
      _
    $region15: #{tpu_custom_call.1} parent=1 // pred_check_branch
      %45 = sbr.rel (0) target = $region17
    $region16: #{tpu_custom_call.1} parent=1 // pred_region
      %47 = dma.done [#allocation5], 128
    $region17: #{tpu_custom_call.1} parent=1 // pred_fallthru
      _
    // Predicated region
    $region18: #{tpu_custom_call.1} parent=1 // pred_check
      _
    $region19: #{tpu_custom_call.1} parent=1 // pred_check_branch
      %49 = sbr.rel (0) target = $region21
    $region20: #{tpu_custom_call.1} parent=1 // pred_region
      %51 = dma.done [#allocation8], 128
    $region21: #{tpu_custom_call.1} parent=1 // pred_fallthru
      _
    // Predicated region
    $region22: #{tpu_custom_call.1} parent=1 // pred_check
      _
    $region23: #{tpu_custom_call.1} parent=1 // pred_check_branch
      %53 = sbr.rel (0) target = $region25
    $region24: #{tpu_custom_call.1} parent=1 // pred_region
      %55 = dma.done [#allocation8], 128
    $region25: #{tpu_custom_call.1} parent=1 // pred_fallthru
      _
    %p56 = scmp.eq.s32.totalorder 0, 0
    // Predicated region
    $region26: #{tpu_custom_call.1} parent=1 // pred_check
      %p57 = pneg %p56
    $region27: #{tpu_custom_call.1} parent=1 // pred_check_branch
      %59 = sbr.rel (%p57) target = $region29
    $region28: #{tpu_custom_call.1} parent=1 // pred_region
      %60 = vst [vmem:[#allocation2] sm:$0xff] 0.0
      %61 = vst [vmem:[#allocation3] sm:$0xff] 0.0
    $region29: #{tpu_custom_call.1} parent=1 // pred_fallthru
      _
    %v62 = vld [vmem:[#allocation4] sm:$0xff]
    %v63 = vld [vmem:[#allocation7] sm:$0xff]
    %v64 = vld [vmem:[#allocation9] sm:$0xff]
    %v65 = vsub.f32 %v62, %v63
    %v66 = vmul.f32 %v65, %v64
    %v67 = vmul.f32 %v66, %v66
    %v68 = vld [vmem:[#allocation2] sm:$0xff]
    %v69 = vadd.f32 %v67, 0.0
    %v70 = vadd.f32 %v68, %v69
    %71 = vst [vmem:[#allocation2] sm:$0xff] %v70
    %v72 = vld [vmem:[#allocation3] sm:$0xff]
    %v73 = vadd.f32 %v64, 0.0
    %v74 = vadd.f32 %v72, %v73
    %75 = vst [vmem:[#allocation3] sm:$0xff] %v74
    // Predicated region
    $region30: #{tpu_custom_call.1} parent=1 // pred_check
      %p76 = pneg %p56
    $region31: #{tpu_custom_call.1} parent=1 // pred_check_branch
      %78 = sbr.rel (%p76) target = $region33
    $region32: #{tpu_custom_call.1} parent=1 // pred_region
      %v79 = vld [vmem:[#allocation2] sm:$0xff]
      %80 = vadd.xlane.f32.xlu0 %v79
      %v81 = vpop.xlane.xlu0 %80
      %v82 = vrot.slane %v81, 4
      %v83 = vadd.f32 %v81, %v82
      %v84 = vrot.slane %v83, 2
      %v85 = vadd.f32 %v83, %v84
      %v86 = vrot.slane %v85, 1
      %v87 = vadd.f32 %v85, %v86
      %s88 = vtos %v87
      %v89 = vld [vmem:[#allocation3] sm:$0xff]
      %90 = vadd.xlane.f32.xlu0 %v89
      %v91 = vpop.xlane.xlu0 %90
      %v92 = vrot.slane %v91, 4
      %v93 = vadd.f32 %v91, %v92
      %v94 = vrot.slane %v93, 2
      %v95 = vadd.f32 %v93, %v94
      %v96 = vrot.slane %v95, 1
      %v97 = vadd.f32 %v95, %v96
      %s98 = vtos %v97
      %v99 = vrcp.pop 3.0
      %v100 = vmul.f32 3.0, %v99
      %v101 = vsub.f32 1.0, %v100
      %v102 = vmul.f32 %v99, %v101
      %v103 = vadd.f32 %v99, %v102
      %vm104 = vweird.f32 %v99
      %v105 = vsel %vm104, %v99, %v103
      %s106 = vtos %v105
      %s107 = smul.f32 %s98, %s106
      %v108 = vstv %s107
      %v109 = vrcp.pop %v108
      %v110 = vmul.f32 %v108, %v109
      %v111 = vsub.f32 1.0, %v110
      %v112 = vmul.f32 %v109, %v111
      %v113 = vadd.f32 %v109, %v112
      %vm114 = vweird.f32 %v108
      %vm115 = vweird.f32 %v109
      %vm116 = vmor %vm114, %vm115
      %v117 = vsel %vm116, %v109, %v113
      %v118 = vand.u32 2147483647, %v108
      %vm119 = vcmp.eq.f32.partialorder %v118, 8.507059e+37
      %v120 = vand.u32 %v108, 2147483648
      %v121 = vor.u32 1.1754944e-38, %v120
      %v122 = vsel %vm119, %v121, %v117
      %s123 = vtos %v122
      %s124 = smul.f32 %s88, %s123
      %s125 = scalar_lea.smem [#allocation10], 0
      %126 = sst [smem:[%s125]] %s124
    $region33: #{tpu_custom_call.1} parent=1 // pred_fallthru
      _
    // Predicated region
    $region34: #{tpu_custom_call.1} parent=1 // pred_check
      _
    $region35: #{tpu_custom_call.1} parent=1 // pred_check_branch
      %128 = sbr.rel (0) target = $region37
    $region36: #{tpu_custom_call.1} parent=1 // pred_region
      %130 = vsyncadd [#allocation6], 0
      %s132 = sshll.u32 %s3, 4
      %s133 = int_to_ptr.hbm [resolvable:$true] %s132
      %135 = dma.smem_to_hbm [#allocation10], 16, %s133, [#allocation6]
    $region37: #{tpu_custom_call.1} parent=1 // pred_fallthru
      _
    // Predicated region
    $region38: #{tpu_custom_call.1} parent=1 // pred_check
      _
    $region39: #{tpu_custom_call.1} parent=1 // pred_check_branch
      %137 = sbr.rel (0) target = $region41
    $region40: #{tpu_custom_call.1} parent=1 // pred_region
      %139 = dma.done [#allocation6], 16
    $region41: #{tpu_custom_call.1} parent=1 // pred_fallthru
      _
    %140 = sfence
    %141 = vsyncpa [#allocation5], 1
    %142 = vsyncpa [#allocation8], 1
    %143 = vsyncpa [#allocation6], 1

</llo_original>
